<compile_context>
chip_gen: v7x
topology: tpu7x:2x2x1
jax: 0.10.0
libtpu: 0.0.40
codegen_flags: <defaults>
</compile_context>

<pallas_src>
import functools
from math import sqrt

import numpy as np
import jax
import jax.numpy as jnp
from jax.experimental import pallas as pl
from jax.experimental.pallas import tpu as pltpu


def _round_up(x, m):
    return ((x + m - 1) // m) * m


def _finish(pre, eps_ref, out_ref, z_dim):
    """pre: (tn, 2Z) f32 pre-activations [logvar_pre | mu]. Writes (tn, 3Z) slab."""
    logvar = jnp.exp(pre[:, :z_dim])
    mu = pre[:, z_dim:]
    z = eps_ref[...].astype(jnp.float32) * mu + logvar      # matches torch source exactly
    out = jnp.concatenate([z, logvar, mu], axis=1)           # (tn, 3Z), one dense store
    out_ref[...] = out.astype(out_ref.dtype)


def _vmlp_collapsed_kernel(x_ref, eps_ref, w_ref, b_ref, out_ref, *, z_dim):
    # Whole forward is affine (activation never applied) -> single MXU matmul.
    pre = jnp.dot(x_ref[...], w_ref[...], preferred_element_type=jnp.float32)
    pre = pre + b_ref[...].astype(jnp.float32)                # (1, 2Z) broadcast
    _finish(pre, eps_ref, out_ref, z_dim)


def _vmlp_two_stage_kernel(x_ref, eps_ref, w_enc_ref, b_enc_ref,
                           w_heads_ref, b_heads_ref, out_ref, *, z_dim):
    h = jnp.dot(x_ref[...], w_enc_ref[...], preferred_element_type=jnp.float32)
    h = h + b_enc_ref[...].astype(jnp.float32)                # (1, H) broadcast
    # Module stores self.activation but never applies it in forward — matched.
    pre = jnp.dot(h.astype(w_heads_ref.dtype), w_heads_ref[...],
                  preferred_element_type=jnp.float32)
    pre = pre + b_heads_ref[...].astype(jnp.float32)          # (1, 2Z) broadcast
    _finish(pre, eps_ref, out_ref, z_dim)


def variational_mlp_forward(inputs, eps, w_enc, b_enc, w_lv, b_lv, w_mu, b_mu,
                            *, row_tile=2048, compute_dtype=jnp.bfloat16,
                            out_dtype=None, collapse_affine=True,
                            min_grid_steps=2):
    """Pallas implementation of VariationalMLP.forward. Returns (z, logvar, mu)."""
    N, Din = inputs.shape
    H = w_enc.shape[1]
    Z = w_mu.shape[1]
    assert w_enc.shape == (Din, H)
    assert w_lv.shape == (H, Z) and w_mu.shape == (H, Z)
    assert eps.shape == (N, Z)
    out_dtype = inputs.dtype if out_dtype is None else out_dtype
    f32 = jnp.float32

    # --- one-time constant prep (f32, then cast) -------------------------------
    # Fuse the two heads; fold the 0.5 into the logvar half (per-constant, not per-row).
    w_heads = jnp.concatenate([0.5 * w_lv.astype(f32), w_mu.astype(f32)], axis=1)   # (H, 2Z)
    b_heads = jnp.concatenate([0.5 * b_lv.astype(f32), b_mu.astype(f32)]).reshape(1, 2 * Z)

    x = inputs.astype(compute_dtype)
    e = eps.astype(compute_dtype)

    if collapse_affine:
        # Valid only while the encoder activation stays unapplied (as in the source).
        w_all = w_enc.astype(f32) @ w_heads                                          # (Din, 2Z)
        b_all = b_enc.astype(f32).reshape(1, H) @ w_heads + b_heads                  # (1, 2Z)
        const_args = (w_all.astype(compute_dtype), b_all)
        const_shapes = ((Din, 2 * Z), (1, 2 * Z))
        kernel = functools.partial(_vmlp_collapsed_kernel, z_dim=Z)
    else:
        const_args = (w_enc.astype(compute_dtype), b_enc.astype(f32).reshape(1, H),
                      w_heads.astype(compute_dtype), b_heads)
        const_shapes = ((Din, H), (1, H), (H, 2 * Z), (1, 2 * Z))
        kernel = functools.partial(_vmlp_two_stage_kernel, z_dim=Z)

    # --- row tiling -------------------------------------------------------------
    tn = int(min(row_tile, _round_up(N, 8)))
    tn = max(8, (tn // 8) * 8)
    # Keep both v7x TensorCores busy: aim for >= min_grid_steps grid steps when N allows.
    if min_grid_steps > 1 and N > 8 * min_grid_steps and pl.cdiv(N, tn) < min_grid_steps:
        tn = max(8, _round_up(pl.cdiv(N, min_grid_steps), 8))
    grid = (pl.cdiv(N, tn),)   # ragged last block: OOB reads are garbage rows whose
                               # writes Pallas drops — no jnp.pad copy needed.

    def row_spec(d):
        return pl.BlockSpec((tn, d), lambda i: (i, 0))

    def const_spec(shape):
        # Constant block index -> stays resident in VMEM, no per-step re-DMA.
        return pl.BlockSpec(shape, lambda i: (0, 0))

    # --- VMEM budget ------------------------------------------------------------
    cd_b = np.dtype(compute_dtype).itemsize
    out_b = np.dtype(out_dtype).itemsize
    io_vmem = 2 * tn * ((Din + Z) * cd_b + 3 * Z * out_b)             # double-buffered I/O
    w_vmem = sum(int(np.prod(s)) * 4 for s in const_shapes)           # resident constants (upper bound)
    vmem_limit = int(min(96 * 2**20, max(16 * 2**20, 2 * (io_vmem + w_vmem) + (4 << 20))))

    out = pl.pallas_call(
        kernel,
        out_shape=jax.ShapeDtypeStruct((N, 3 * Z), out_dtype),
        grid=grid,
        in_specs=[row_spec(Din), row_spec(Z)] + [const_spec(s) for s in const_shapes],
        out_specs=row_spec(3 * Z),
        compiler_params=pltpu.CompilerParams(
            dimension_semantics=("parallel",),     # rows independent -> megacore-shardable
            vmem_limit_bytes=vmem_limit,
        ),
    )(x, e, *const_args)

    z = out[:, :Z]
    logvar = out[:, Z:2 * Z]
    mu = out[:, 2 * Z:]
    return z, logvar, mu


def variational_mlp_ref(inputs, eps, w_enc, b_enc, w_lv, b_lv, w_mu, b_mu):
    """Pure-JAX f32 reference mirroring the PyTorch module's forward."""
    x = inputs.astype(jnp.float32)
    h = x @ w_enc.astype(jnp.float32) + b_enc.astype(jnp.float32)
    logvar = jnp.exp(0.5 * (h @ w_lv.astype(jnp.float32) + b_lv.astype(jnp.float32)))
    mu = h @ w_mu.astype(jnp.float32) + b_mu.astype(jnp.float32)
    z = eps.astype(jnp.float32) * mu + logvar
    return z, logvar, mu


if __name__ == "__main__":
    # Small shapes consistent with the module; batch chosen non-multiple-of-tile to
    # exercise the ragged last block.
    batch = 60
    in_features = 32
    hidden_dim = 64
    z_dim = 16

    key = jax.random.PRNGKey(0)
    kx, keps, k1, k2, k3, k4, k5, k6 = jax.random.split(key, 8)

    inputs = jax.random.normal(kx, (batch, in_features), dtype=jnp.float32)
    eps = jax.random.normal(keps, (batch, z_dim), dtype=jnp.float32)

    def linear_init(kw, kb, fan_in, fan_out):
        lim = 1.0 / sqrt(fan_in)
        w = jax.random.uniform(kw, (fan_in, fan_out), dtype=jnp.float32,
                               minval=-lim, maxval=lim)
        b = jax.random.uniform(kb, (fan_out,), dtype=jnp.float32,
                               minval=-lim, maxval=lim)
        return w, b

    w_enc, b_enc = linear_init(k1, k2, in_features, hidden_dim)
    w_lv, b_lv = linear_init(k3, k4, hidden_dim, z_dim)
    w_mu, b_mu = linear_init(k5, k6, hidden_dim, z_dim)

    z_r, lv_r, mu_r = variational_mlp_ref(
        inputs, eps, w_enc, b_enc, w_lv, b_lv, w_mu, b_mu)

    # 1) f32 compute, explicit two-stage path (exact structural match, tight tolerance).
    z, logvar, mu = variational_mlp_forward(
        inputs, eps, w_enc, b_enc, w_lv, b_lv, w_mu, b_mu,
        compute_dtype=jnp.float32, collapse_affine=False)
    jax.block_until_ready((z, logvar, mu))
    assert jnp.allclose(z, z_r, rtol=1e-5, atol=1e-5)
    assert jnp.allclose(logvar, lv_r, rtol=1e-5, atol=1e-5)
    assert jnp.allclose(mu, mu_r, rtol=1e-5, atol=1e-5)

    # 2) Default fast path: bf16 I/O + collapsed affine + fused (tn, 3Z) output slab.
    z, logvar, mu = variational_mlp_forward(
        inputs, eps, w_enc, b_enc, w_lv, b_lv, w_mu, b_mu)
    jax.block_until_ready((z, logvar, mu))
    assert jnp.allclose(z, z_r, rtol=3e-2, atol=3e-2)
    assert jnp.allclose(logvar, lv_r, rtol=3e-2, atol=3e-2)
    assert jnp.allclose(mu, mu_r, rtol=3e-2, atol=3e-2)

    print("KERNEL_OK")
</pallas_src>

<mosaic_0001>
module attributes {stable_mosaic.version = 11 : i64} {
  func.func @_vmlp_two_stage_kernel(%arg0: i32, %arg1: memref<32x32xf32, #tpu.memory_space<vmem>>, %arg2: memref<32x16xf32, #tpu.memory_space<vmem>>, %arg3: memref<32x64xf32, #tpu.memory_space<vmem>>, %arg4: memref<1x64xf32, #tpu.memory_space<vmem>>, %arg5: memref<64x32xf32, #tpu.memory_space<vmem>>, %arg6: memref<1x32xf32, #tpu.memory_space<vmem>>, %arg7: memref<32x48xf32, #tpu.memory_space<vmem>>) attributes {dimension_semantics = [#tpu.dimension_semantics<parallel>], iteration_bounds = array<i64: 2>, scalar_prefetch = 0 : i64, scratch_operands = 0 : i64, tpu.core_type = #tpu.core_type<tc>, window_params = [{transform_indices = @transform_0, window_bounds = array<i64: 32, 32>}, {transform_indices = @transform_1, window_bounds = array<i64: 32, 16>}, {pipeline_mode = #tpu.pipeline_mode<synchronous>, transform_indices = @transform_2, window_bounds = array<i64: 32, 64>}, {pipeline_mode = #tpu.pipeline_mode<synchronous>, transform_indices = @transform_3, window_bounds = array<i64: 1, 64>}, {pipeline_mode = #tpu.pipeline_mode<synchronous>, transform_indices = @transform_4, window_bounds = array<i64: 64, 32>}, {pipeline_mode = #tpu.pipeline_mode<synchronous>, transform_indices = @transform_5, window_bounds = array<i64: 1, 32>}, {transform_indices = @transform_6, window_bounds = array<i64: 32, 48>}]} {
    %c0 = arith.constant 0 : index
    %c0_0 = arith.constant 0 : index
    %0 = vector.load %arg1[%c0, %c0_0] : memref<32x32xf32, #tpu.memory_space<vmem>>, vector<32x32xf32>
    %c0_1 = arith.constant 0 : index
    %c0_2 = arith.constant 0 : index
    %1 = vector.load %arg3[%c0_1, %c0_2] : memref<32x64xf32, #tpu.memory_space<vmem>>, vector<32x64xf32>
    %cst = arith.constant dense<0.000000e+00> : vector<32x64xf32>
    %2 = tpu.matmul %0, %1, %cst {dimension_numbers = #tpu.dot_dimension_numbers<[1], [0], [0], [1], [0, 0, 1, 1], [], []>} : vector<32x32xf32>, vector<32x64xf32>, vector<32x64xf32> -> vector<32x64xf32>
    %c0_3 = arith.constant 0 : index
    %c0_4 = arith.constant 0 : index
    %3 = vector.load %arg4[%c0_3, %c0_4] : memref<1x64xf32, #tpu.memory_space<vmem>>, vector<1x64xf32>
    %4 = vector.broadcast %3 : vector<1x64xf32> to vector<32x64xf32>
    %5 = arith.addf %2, %4 : vector<32x64xf32>
    %c0_5 = arith.constant 0 : index
    %c0_6 = arith.constant 0 : index
    %6 = vector.load %arg5[%c0_5, %c0_6] : memref<64x32xf32, #tpu.memory_space<vmem>>, vector<64x32xf32>
    %cst_7 = arith.constant dense<0.000000e+00> : vector<32x32xf32>
    %7 = tpu.matmul %5, %6, %cst_7 {dimension_numbers = #tpu.dot_dimension_numbers<[1], [0], [0], [1], [0, 0, 1, 1], [], []>} : vector<32x64xf32>, vector<64x32xf32>, vector<32x32xf32> -> vector<32x32xf32>
    %c0_8 = arith.constant 0 : index
    %c0_9 = arith.constant 0 : index
    %8 = vector.load %arg6[%c0_8, %c0_9] : memref<1x32xf32, #tpu.memory_space<vmem>>, vector<1x32xf32>
    %9 = vector.broadcast %8 : vector<1x32xf32> to vector<32x32xf32>
    %10 = arith.addf %7, %9 : vector<32x32xf32>
    %11 = vector.extract_strided_slice %10 {offsets = [0, 0], sizes = [32, 16], strides = [1, 1]} : vector<32x32xf32> to vector<32x16xf32>
    %12 = math.exp %11 : vector<32x16xf32>
    %13 = vector.extract_strided_slice %10 {offsets = [0, 16], sizes = [32, 16], strides = [1, 1]} : vector<32x32xf32> to vector<32x16xf32>
    %c0_10 = arith.constant 0 : index
    %c0_11 = arith.constant 0 : index
    %14 = vector.load %arg2[%c0_10, %c0_11] : memref<32x16xf32, #tpu.memory_space<vmem>>, vector<32x16xf32>
    %15 = arith.mulf %14, %13 : vector<32x16xf32>
    %16 = arith.addf %15, %12 : vector<32x16xf32>
    %17 = tpu.concatenate %16, %12, %13 in 1 : vector<32x16xf32>, vector<32x16xf32>, vector<32x16xf32> -> vector<32x48xf32>
    %c0_12 = arith.constant 0 : index
    %c0_13 = arith.constant 0 : index
    %18 = vector.load %arg7[%c0_12, %c0_13] : memref<32x48xf32, #tpu.memory_space<vmem>>, vector<32x48xf32>
    tpu.vector_store %arg7[%c0_12, %c0_13], %17 {strides = array<i32>} : memref<32x48xf32, #tpu.memory_space<vmem>>, vector<32x48xf32>,
    return
  }
  func.func @transform_0(%arg0: i32) -> (i32, i32) {
    %c0_i32 = arith.constant 0 : i32
    %c0_i32_0 = arith.constant 0 : i32
    return %arg0, %c0_i32 : i32, i32
  }
  func.func @transform_1(%arg0: i32) -> (i32, i32) {
    %c0_i32 = arith.constant 0 : i32
    %c0_i32_0 = arith.constant 0 : i32
    return %arg0, %c0_i32 : i32, i32
  }
  func.func @transform_2(%arg0: i32) -> (i32, i32) {
    %c0_i32 = arith.constant 0 : i32
    %c0_i32_0 = arith.constant 0 : i32
    %c0_i32_1 = arith.constant 0 : i32
    return %c0_i32, %c0_i32_0 : i32, i32
  }
  func.func @transform_3(%arg0: i32) -> (i32, i32) {
    %c0_i32 = arith.constant 0 : i32
    %c0_i32_0 = arith.constant 0 : i32
    %c0_i32_1 = arith.constant 0 : i32
    return %c0_i32, %c0_i32_0 : i32, i32
  }
  func.func @transform_4(%arg0: i32) -> (i32, i32) {
    %c0_i32 = arith.constant 0 : i32
    %c0_i32_0 = arith.constant 0 : i32
    %c0_i32_1 = arith.constant 0 : i32
    return %c0_i32, %c0_i32_0 : i32, i32
  }
  func.func @transform_5(%arg0: i32) -> (i32, i32) {
    %c0_i32 = arith.constant 0 : i32
    %c0_i32_0 = arith.constant 0 : i32
    %c0_i32_1 = arith.constant 0 : i32
    return %c0_i32, %c0_i32_0 : i32, i32
  }
  func.func @transform_6(%arg0: i32) -> (i32, i32) {
    %c0_i32 = arith.constant 0 : i32
    %c0_i32_0 = arith.constant 0 : i32
    return %arg0, %c0_i32 : i32, i32
  }
}

</mosaic_0001>

<llo_original>
// kernel: tpu_custom_call.1
$region0: #{tpu_custom_call.1}
  #allocation0 [shape = 'u32[]', space=smem, size = 0x4, offset = 0x4, fixed_abs, tag = 'smem constant byte address 0x4 - core index']
  #allocation1 [shape = 'u32[144,128]{1,0:T(1,128)}', space=vmem, size = 0x12000, scoped, tag = 'internal scratch']
  %s0 = inlined_call_operand.vmem [shape: f32[60,32], index: 0, kind: input, shape index: {}]
  %s1 = inlined_call_operand.vmem [shape: f32[60,16], index: 1, kind: input, shape index: {}]
  %s2 = inlined_call_operand.vmem [shape: f32[32,64], index: 2, kind: input, shape index: {}]
  %s3 = inlined_call_operand.vmem [shape: f32[1,64], index: 3, kind: input, shape index: {}]
  %s4 = inlined_call_operand.vmem [shape: f32[64,32], index: 4, kind: input, shape index: {}]
  %s5 = inlined_call_operand.vmem [shape: f32[1,32], index: 5, kind: input, shape index: {}]
  %s6 = inlined_call_operand.vmem [shape: f32[60,48], index: 6, kind: output, shape index: {}]
  %s7 = sld [smem:[#allocation0]]
  $region57: #{tpu_custom_call.1} parent=0
    _
  %s9 = ssub.s32 1, %s7
  %s10 = scalar_select 0, %s9, %s7
  loop: start=0, step=1, limit=4
  $region2: #{tpu_custom_call.1} parent=0 // loop_pre_header
    _
  $region3: #{tpu_custom_call.1} parent=0 // loop_header
    %s12 = sphi 0, %s16
    %p13 = scmp.ge.s32.totalorder %s12, 4
    %s22 = sphi 0, %s24
    %s25 = sphi 0, %s22
    %s26 = sphi 0, %s25
    %s42 = sphi 0, %s26
    %s48 = sphi 0, %s50
    %s51 = sphi 0, %s48
    %s52 = sphi 0, %s51
    %s68 = sphi 0, %s52
    %s72 = sphi 0, %s72
    %s74 = sphi 0, %s72
    %s75 = sphi 0, %s74
    %s89 = sphi 0, %s75
    %s93 = sphi 0, %s93
    %s95 = sphi 0, %s93
    %s96 = sphi 0, %s95
    %s110 = sphi 0, %s96
    %s114 = sphi 0, %s114
    %s116 = sphi 0, %s114
    %s117 = sphi 0, %s116
    %s131 = sphi 0, %s117
    %s135 = sphi 0, %s135
    %s137 = sphi 0, %s135
    %s138 = sphi 0, %s137
    %s152 = sphi 0, %s138
    %s158 = sphi 0, %s160
    %s161 = sphi 0, %s158
    %s162 = sphi 0, %s161
    %s178 = sphi 0, %s162
  $region4: #{tpu_custom_call.1} parent=0 // loop_header_branch
    %15 = sbr.rel (%p13) target = $region8
  $region5: #{tpu_custom_call.1} parent=0 // loop_body
    %s17 = ssub.s32 %s12, 1
    %s18 = ssub.s32 %s12, 2
    %s19 = sadd.s32 %s12, 1
    %s20 = ssub.s32 %s12, %s19
    %p21 = scmp.eq.s32.totalorder %s20, 0
    %s23 = sadd.s32 %s22, 1
    %s24 = scalar_select %p21, %s22, %s23
    %p27 = pneg %p21
    %p28 = scmp.eq.s32.totalorder %s12, 1
    %p29 = por %p27, %p28
    %p30 = scmp.ne.s32.totalorder %s22, %s25
    %p31 = scmp.eq.s32.totalorder %s12, 0
    %p32 = por %p30, %p31
    %p33 = scmp.ne.s32.totalorder %s22, %s25
    %p34 = scmp.eq.s32.totalorder %s17, 1
    %p35 = por %p33, %p34
    %p36 = scmp.ne.s32.totalorder %s25, %s26
    %p37 = scmp.eq.s32.totalorder %s17, 0
    %p38 = por %p36, %p37
    %p39 = scmp.ne.s32.totalorder %s25, %s26
    %p40 = scmp.eq.s32.totalorder %s18, 1
    %p41 = por %p39, %p40
    %p43 = scmp.ne.s32.totalorder %s26, %s42
    %p44 = scmp.eq.s32.totalorder %s18, 0
    %p45 = por %p43, %p44
    %s46 = ssub.s32 %s12, %s19
    %p47 = scmp.eq.s32.totalorder %s46, 0
    %s49 = sadd.s32 %s48, 1
    %s50 = scalar_select %p47, %s48, %s49
    %p53 = pneg %p47
    %p54 = scmp.eq.s32.totalorder %s12, 1
    %p55 = por %p53, %p54
    %p56 = scmp.ne.s32.totalorder %s48, %s51
    %p57 = scmp.eq.s32.totalorder %s12, 0
    %p58 = por %p56, %p57
    %p59 = scmp.ne.s32.totalorder %s48, %s51
    %p60 = scmp.eq.s32.totalorder %s17, 1
    %p61 = por %p59, %p60
    %p62 = scmp.ne.s32.totalorder %s51, %s52
    %p63 = scmp.eq.s32.totalorder %s17, 0
    %p64 = por %p62, %p63
    %p65 = scmp.ne.s32.totalorder %s51, %s52
    %p66 = scmp.eq.s32.totalorder %s18, 1
    %p67 = por %p65, %p66
    %p69 = scmp.ne.s32.totalorder %s52, %s68
    %p70 = scmp.eq.s32.totalorder %s18, 0
    %p71 = por %p69, %p70
    %s73 = sadd.s32 %s72, 1
    %p76 = scmp.eq.s32.totalorder %s12, 1
    %p77 = scmp.ne.s32.totalorder %s72, %s74
    %p78 = scmp.eq.s32.totalorder %s12, 0
    %p79 = por %p77, %p78
    %p80 = scmp.ne.s32.totalorder %s72, %s74
    %p81 = scmp.eq.s32.totalorder %s17, 1
    %p82 = por %p80, %p81
    %p83 = scmp.ne.s32.totalorder %s74, %s75
    %p84 = scmp.eq.s32.totalorder %s17, 0
    %p85 = por %p83, %p84
    %p86 = scmp.ne.s32.totalorder %s74, %s75
    %p87 = scmp.eq.s32.totalorder %s18, 1
    %p88 = por %p86, %p87
    %p90 = scmp.ne.s32.totalorder %s75, %s89
    %p91 = scmp.eq.s32.totalorder %s18, 0
    %p92 = por %p90, %p91
    %s94 = sadd.s32 %s93, 1
    %p97 = scmp.eq.s32.totalorder %s12, 1
    %p98 = scmp.ne.s32.totalorder %s93, %s95
    %p99 = scmp.eq.s32.totalorder %s12, 0
    %p100 = por %p98, %p99
    %p101 = scmp.ne.s32.totalorder %s93, %s95
    %p102 = scmp.eq.s32.totalorder %s17, 1
    %p103 = por %p101, %p102
    %p104 = scmp.ne.s32.totalorder %s95, %s96
    %p105 = scmp.eq.s32.totalorder %s17, 0
    %p106 = por %p104, %p105
    %p107 = scmp.ne.s32.totalorder %s95, %s96
    %p108 = scmp.eq.s32.totalorder %s18, 1
    %p109 = por %p107, %p108
    %p111 = scmp.ne.s32.totalorder %s96, %s110
    %p112 = scmp.eq.s32.totalorder %s18, 0
    %p113 = por %p111, %p112
    %s115 = sadd.s32 %s114, 1
    %p118 = scmp.eq.s32.totalorder %s12, 1
    %p119 = scmp.ne.s32.totalorder %s114, %s116
    %p120 = scmp.eq.s32.totalorder %s12, 0
    %p121 = por %p119, %p120
    %p122 = scmp.ne.s32.totalorder %s114, %s116
    %p123 = scmp.eq.s32.totalorder %s17, 1
    %p124 = por %p122, %p123
    %p125 = scmp.ne.s32.totalorder %s116, %s117
    %p126 = scmp.eq.s32.totalorder %s17, 0
    %p127 = por %p125, %p126
    %p128 = scmp.ne.s32.totalorder %s116, %s117
    %p129 = scmp.eq.s32.totalorder %s18, 1
    %p130 = por %p128, %p129
    %p132 = scmp.ne.s32.totalorder %s117, %s131
    %p133 = scmp.eq.s32.totalorder %s18, 0
    %p134 = por %p132, %p133
    %s136 = sadd.s32 %s135, 1
    %p139 = scmp.eq.s32.totalorder %s12, 1
    %p140 = scmp.ne.s32.totalorder %s135, %s137
    %p141 = scmp.eq.s32.totalorder %s12, 0
    %p142 = por %p140, %p141
    %p143 = scmp.ne.s32.totalorder %s135, %s137
    %p144 = scmp.eq.s32.totalorder %s17, 1
    %p145 = por %p143, %p144
    %p146 = scmp.ne.s32.totalorder %s137, %s138
    %p147 = scmp.eq.s32.totalorder %s17, 0
    %p148 = por %p146, %p147
    %p149 = scmp.ne.s32.totalorder %s137, %s138
    %p150 = scmp.eq.s32.totalorder %s18, 1
    %p151 = por %p149, %p150
    %p153 = scmp.ne.s32.totalorder %s138, %s152
    %p154 = scmp.eq.s32.totalorder %s18, 0
    %p155 = por %p153, %p154
    %s156 = ssub.s32 %s12, %s19
    %p157 = scmp.eq.s32.totalorder %s156, 0
    %s159 = sadd.s32 %s158, 1
    %s160 = scalar_select %p157, %s158, %s159
    %p163 = pneg %p157
    %p164 = scmp.eq.s32.totalorder %s12, 1
    %p165 = por %p163, %p164
    %p166 = scmp.ne.s32.totalorder %s158, %s161
    %p167 = scmp.eq.s32.totalorder %s12, 0
    %p168 = por %p166, %p167
    %p169 = scmp.ne.s32.totalorder %s158, %s161
    %p170 = scmp.eq.s32.totalorder %s17, 1
    %p171 = por %p169, %p170
    %p172 = scmp.ne.s32.totalorder %s161, %s162
    %p173 = scmp.eq.s32.totalorder %s17, 0
    %p174 = por %p172, %p173
    %p175 = scmp.ne.s32.totalorder %s161, %s162
    %p176 = scmp.eq.s32.totalorder %s18, 1
    %p177 = por %p175, %p176
    %p179 = scmp.ne.s32.totalorder %s162, %s178
    %p180 = scmp.eq.s32.totalorder %s18, 0
    %p181 = por %p179, %p180
    %p182 = scmp.le.s32.totalorder 1, %s12
    %p183 = scmp.lt.s32.totalorder %s12, 3
    %p184 = pnand %p182, %p183
    %p185 = pneg %p184
    // Predicated region
    $region9: #{tpu_custom_call.1} parent=5 // pred_check
      _
    $region10: #{tpu_custom_call.1} parent=5 // pred_check_branch
      %187 = sbr.rel (%p184) target = $region12
    $region11: #{tpu_custom_call.1} parent=5 // pred_region
      %s188 = ssub.s32 %s12, 1
      // Predicated region
      $region13: #{tpu_custom_call.1} parent=11 // pred_check
        %p189 = pneg %p85
      $region14: #{tpu_custom_call.1} parent=11 // pred_check_branch
        %191 = sbr.rel (%p189) target = $region16
      $region15: #{tpu_custom_call.1} parent=11 // pred_region
        _
      $region16: #{tpu_custom_call.1} parent=11 // pred_fallthru
        _
      // Predicated region
      $region17: #{tpu_custom_call.1} parent=11 // pred_check
        %p192 = pneg %p106
      $region18: #{tpu_custom_call.1} parent=11 // pred_check_branch
        %194 = sbr.rel (%p192) target = $region20
      $region19: #{tpu_custom_call.1} parent=11 // pred_region
        _
      $region20: #{tpu_custom_call.1} parent=11 // pred_fallthru
        _
      // Predicated region
      $region21: #{tpu_custom_call.1} parent=11 // pred_check
        %p195 = pneg %p127
      $region22: #{tpu_custom_call.1} parent=11 // pred_check_branch
        %197 = sbr.rel (%p195) target = $region24
      $region23: #{tpu_custom_call.1} parent=11 // pred_region
        _
      $region24: #{tpu_custom_call.1} parent=11 // pred_fallthru
        _
      // Predicated region
      $region25: #{tpu_custom_call.1} parent=11 // pred_check
        %p198 = pneg %p148
      $region26: #{tpu_custom_call.1} parent=11 // pred_check_branch
        %200 = sbr.rel (%p198) target = $region28
      $region27: #{tpu_custom_call.1} parent=11 // pred_region
        _
      $region28: #{tpu_custom_call.1} parent=11 // pred_fallthru
        _
    $region12: #{tpu_custom_call.1} parent=5 // pred_fallthru
      _
    %p201 = scmp.lt.s32.totalorder %s12, 2
    // Predicated region
    $region29: #{tpu_custom_call.1} parent=5 // pred_check
      %p202 = pneg %p201
    $region30: #{tpu_custom_call.1} parent=5 // pred_check_branch
      %204 = sbr.rel (%p202) target = $region32
    $region31: #{tpu_custom_call.1} parent=5 // pred_region
      // Predicated region
      $region33: #{tpu_custom_call.1} parent=31 // pred_check
        %p205 = pneg %p32
      $region34: #{tpu_custom_call.1} parent=31 // pred_check_branch
        %207 = sbr.rel (%p205) target = $region36
      $region35: #{tpu_custom_call.1} parent=31 // pred_region
        %s208 = smul.u32 4, %s12
        %p209 = scmp.lt.s32.totalorder %s208, 7
        %s210 = scalar_select %p209, %s208, 7
        %s211 = smul.addr %s210, 8
        %s212 = scalar_lea.vmem %s0, %s211
        %s213 = smul.u32 4, %s12
      $region36: #{tpu_custom_call.1} parent=31 // pred_fallthru
        _
      // Predicated region
      $region37: #{tpu_custom_call.1} parent=31 // pred_check
        %p214 = pneg %p58
      $region38: #{tpu_custom_call.1} parent=31 // pred_check_branch
        %216 = sbr.rel (%p214) target = $region40
      $region39: #{tpu_custom_call.1} parent=31 // pred_region
        %s217 = smul.u32 4, %s12
        %p218 = scmp.lt.s32.totalorder %s217, 7
        %s219 = scalar_select %p218, %s217, 7
        %s220 = smul.addr %s219, 8
        %s221 = scalar_lea.vmem %s1, %s220
        %s222 = smul.u32 4, %s12
      $region40: #{tpu_custom_call.1} parent=31 // pred_fallthru
        _
    $region32: #{tpu_custom_call.1} parent=5 // pred_fallthru
      _
    %p223 = scmp.le.s32.totalorder 1, %s12
    %p224 = scmp.lt.s32.totalorder %s12, 3
    %p225 = pnand %p223, %p224
    %p226 = pneg %p225
    // Predicated region
    $region41: #{tpu_custom_call.1} parent=5 // pred_check
      _
    $region42: #{tpu_custom_call.1} parent=5 // pred_check_branch
      %228 = sbr.rel (%p225) target = $region44
    $region43: #{tpu_custom_call.1} parent=5 // pred_region
      %s229 = ssub.s32 %s12, 1
      %s230 = smul.u32 4, %s17
      %p231 = scmp.lt.s32.totalorder %s230, 7
      %s232 = scalar_select %p231, %s230, 7
      %s233 = smul.addr %s232, 8
      %s234 = scalar_lea.vmem %s0, %s233
      %p235 = pneg %p38
      %p236 = pneg %p35
      %s237 = smul.u32 4, %s17
      %p238 = scmp.lt.s32.totalorder %s237, 7
      %s239 = scalar_select %p238, %s237, 7
      %s240 = smul.addr %s239, 8
      %s241 = scalar_lea.vmem %s1, %s240
      %p242 = pneg %p64
      %p243 = pneg %p61
      %p244 = pneg %p85
      %p245 = pneg %p82
      %p246 = pneg %p106
      %p247 = pneg %p103
      %p248 = pneg %p127
      %p249 = pneg %p124
      %p250 = pneg %p148
      %p251 = pneg %p145
      %p252 = pneg %p174
      %p253 = pneg %p171
      %s254 = smul.u32 4, %s17
      %p255 = scmp.lt.s32.totalorder %s254, 7
      %s256 = scalar_select %p255, %s254, 7
      %s257 = smul.addr %s256, 8
      %s258 = scalar_lea.vmem %s6, %s257
      %s259 = smul.u32 4, %s17
      %p260 = scmp.lt.s32.totalorder %s259, 7
      %s261 = scalar_select %p260, %s259, 7
      %s262 = smul.addr %s261, 8
      %s263 = scalar_lea.vmem %s0, %s262
      %s264 = smul.u32 4, %s17
      %s265 = smul.u32 4, %s17
      %p266 = scmp.lt.s32.totalorder %s265, 7
      %s267 = scalar_select %p266, %s265, 7
      %s268 = smul.addr %s267, 8
      %s269 = scalar_lea.vmem %s1, %s268
      %s270 = smul.u32 4, %s17
      %s271 = smul.u32 4, %s17
      %p272 = scmp.lt.s32.totalorder %s271, 7
      %s273 = scalar_select %p272, %s271, 7
      %s274 = smul.addr %s273, 8
      %s275 = scalar_lea.vmem %s6, %s274
      %s276 = smul.u32 4, %s17
      %v277 = vld [vmem:[%s263] sm:$0xff]
      %v278 = vld [vmem:[%s263 + $0x8] sm:$0xff]
      %v279 = vld [vmem:[%s263 + $0x10] sm:$0xff]
      %v280 = vld [vmem:[%s263 + $0x18] sm:$0xff]
      %v281 = vld [vmem:[%s2] sm:$0xff]
      %v282 = vld [vmem:[%s2 + $0x8] sm:$0xff]
      %v283 = vld [vmem:[%s2 + $0x10] sm:$0xff]
      %v284 = vld [vmem:[%s2 + $0x18] sm:$0xff]
      %v285 = vld [vmem:[%s3] sm:$0x1]
      %v287 = vlaneseq
      %v288 = vshrl.u32 %v287, 7
      %v289 = vsub.s32 0, %v288
      %v290 = vrot.slane %v285, %v289
      %vm292 = vcmask 261120
      %v294 = vsel %vm292, %v277, 0
      %v297 = vsel %vm292, %v278, 0
      %v300 = vsel %vm292, %v279, 0
      %v303 = vsel %vm292, %v280, 0
      %305 = vmatprep.subr.mxu0 0.0
      %306 = vmatpush1.msra.mxu0 %v281
      %307 = vmatprep.subr.mxu0 0.0
      %308 = vmatpush1.msra.mxu0 %v282
      %309 = vmatprep.subr.mxu0 0.0
      %310 = vmatpush1.msra.mxu0 %v283
      %311 = vmatprep.subr.mxu0 0.0
      %312 = vmatpush1.msra.mxu0 %v284
      %313 = vmatprep.subr.mxu0 0.0
      %314 = vmatpush1.msra.mxu0 0.0
      %315 = vmatprep.subr.mxu0 0.0
      %316 = vmatpush1.msra.mxu0 0.0
      %317 = vmatprep.subr.mxu0 0.0
      %318 = vmatpush1.msra.mxu0 0.0
      %319 = vmatprep.subr.mxu0 0.0
      %320 = vmatpush1.msra.mxu0 0.0
      %321 = vmatprep.subr.mxu0 0.0
      %322 = vmatpush1.msra.mxu0 0.0
      %323 = vmatprep.subr.mxu0 0.0
      %324 = vmatpush1.msra.mxu0 0.0
      %325 = vmatprep.subr.mxu0 0.0
      %326 = vmatpush1.msra.mxu0 0.0
      %327 = vmatprep.subr.mxu0 0.0
      %328 = vmatpush1.msra.mxu0 0.0
      %329 = vmatprep.subr.mxu0 0.0
      %330 = vmatpush1.msra.mxu0 0.0
      %331 = vmatprep.subr.mxu0 0.0
      %332 = vmatpush1.msra.mxu0 0.0
      %333 = vmatprep.subr.mxu0 0.0
      %334 = vmatpush1.msra.mxu0 0.0
      %335 = vmatprep.subr.mxu0 0.0
      %336 = vmatpush1.msra.mxu0 0.0
      %337 = vmatprep.subr.mxu0 0.0
      %338 = vmatpush1.msra.mxu0 0.0
      %339 = vmatprep.subr.mxu0 0.0
      %340 = vmatpush1.msra.mxu0 0.0
      %341 = vmatprep.subr.mxu0 0.0
      %342 = vmatpush1.msra.mxu0 0.0
      %343 = vmatprep.subr.mxu0 0.0
      %344 = vmatpush1.msra.mxu0 0.0
      %345 = vmatprep.subr.mxu0 0.0
      %346 = vmatpush1.msra.mxu0 0.0
      %347 = vmatprep.subr.mxu0 0.0
      %348 = vmatpush1.msra.mxu0 0.0
      %349 = vmatprep.subr.mxu0 0.0
      %350 = vmatpush1.msra.mxu0 0.0
      %351 = vmatprep.subr.mxu0 0.0
      %352 = vmatpush1.msra.mxu0 0.0
      %353 = vmatprep.subr.mxu0 0.0
      %354 = vmatpush1.msra.mxu0 0.0
      %355 = vmatprep.subr.mxu0 0.0
      %356 = vmatpush1.msra.mxu0 0.0
      %357 = vmatprep.subr.mxu0 0.0
      %358 = vmatpush1.msra.mxu0 0.0
      %359 = vmatprep.subr.mxu0 0.0
      %360 = vmatpush1.msra.mxu0 0.0
      %361 = vmatprep.subr.mxu0 0.0
      %362 = vmatpush1.msra.mxu0 0.0
      %363 = vmatprep.subr.mxu0 0.0
      %364 = vmatpush1.msra.mxu0 0.0
      %365 = vmatprep.subr.mxu0 0.0
      %366 = vmatpush1.msra.mxu0 0.0
      %367 = vmatprep.subr.mxu0 0.0
      %368 = vmatpush1.msra.mxu0 0.0
      %369 = vmatprep.mubr.f32.mxu0 0.0
      %370 = vmatmul.mubr.f32.gmra.mrb[0].mxu0 %v294
      %v371 = vpop.f32.mrb[0].mxu0
      %v372 = vadd.f32 %v290, %v371
      %v373 = vpop.f32.mrb[0].mxu0
      %374 = vmatprep.mubr.f32.mxu0 0.0
      %375 = vmatmul.mubr.f32.gmra.mrb[0].mxu0 %v297
      %v376 = vpop.f32.mrb[0].mxu0
      %v377 = vadd.f32 %v290, %v376
      %v378 = vpop.f32.mrb[0].mxu0
      %379 = vmatprep.mubr.f32.mxu0 0.0
      %380 = vmatmul.mubr.f32.gmra.mrb[0].mxu0 %v300
      %v381 = vpop.f32.mrb[0].mxu0
      %v382 = vadd.f32 %v290, %v381
      %v383 = vpop.f32.mrb[0].mxu0
      %384 = vmatprep.mubr.f32.mxu0 0.0
      %385 = vmatmul.mubr.f32.gmra.mrb[0].mxu0 %v303
      %v386 = vpop.f32.mrb[0].mxu0
      %v387 = vadd.f32 %v290, %v386
      %v388 = vpop.f32.mrb[0].mxu0
      %389 = vdwg.mxu0
      %v390 = vld [vmem:[%s4] sm:$0xff]
      %v391 = vld [vmem:[%s4 + $0x8] sm:$0xff]
      %v392 = vld [vmem:[%s4 + $0x10] sm:$0xff]
      %v393 = vld [vmem:[%s4 + $0x18] sm:$0xff]
      %v394 = vld [vmem:[%s4 + $0x20] sm:$0xff]
      %v395 = vld [vmem:[%s4 + $0x28] sm:$0xff]
      %v396 = vld [vmem:[%s4 + $0x30] sm:$0xff]
      %v397 = vld [vmem:[%s4 + $0x38] sm:$0xff]
      %v398 = vld [vmem:[%s5] sm:$0x1]
      %v400 = vlaneseq
      %v401 = vshrl.u32 %v400, 7
      %v402 = vsub.s32 0, %v401
      %v403 = vrot.slane %v398, %v402
      %vm405 = vcmask 523264
      %v407 = vsel %vm405, %v372, 0
      %v410 = vsel %vm405, %v377, 0
      %v413 = vsel %vm405, %v382, 0
      %v416 = vsel %vm405, %v387, 0
      %418 = vmatprep.subr.mxu0 0.0
      %419 = vmatpush1.msra.mxu0 %v390
      %420 = vmatprep.subr.mxu0 0.0
      %421 = vmatpush1.msra.mxu0 %v391
      %422 = vmatprep.subr.mxu0 0.0
      %423 = vmatpush1.msra.mxu0 %v392
      %424 = vmatprep.subr.mxu0 0.0
      %425 = vmatpush1.msra.mxu0 %v393
      %426 = vmatprep.subr.mxu0 0.0
      %427 = vmatpush1.msra.mxu0 %v394
      %428 = vmatprep.subr.mxu0 0.0
      %429 = vmatpush1.msra.mxu0 %v395
      %430 = vmatprep.subr.mxu0 0.0
      %431 = vmatpush1.msra.mxu0 %v396
      %432 = vmatprep.subr.mxu0 0.0
      %433 = vmatpush1.msra.mxu0 %v397
      %434 = vmatprep.subr.mxu0 0.0
      %435 = vmatpush1.msra.mxu0 0.0
      %436 = vmatprep.subr.mxu0 0.0
      %437 = vmatpush1.msra.mxu0 0.0
      %438 = vmatprep.subr.mxu0 0.0
      %439 = vmatpush1.msra.mxu0 0.0
      %440 = vmatprep.subr.mxu0 0.0
      %441 = vmatpush1.msra.mxu0 0.0
      %442 = vmatprep.subr.mxu0 0.0
      %443 = vmatpush1.msra.mxu0 0.0
      %444 = vmatprep.subr.mxu0 0.0
      %445 = vmatpush1.msra.mxu0 0.0
      %446 = vmatprep.subr.mxu0 0.0
      %447 = vmatpush1.msra.mxu0 0.0
      %448 = vmatprep.subr.mxu0 0.0
      %449 = vmatpush1.msra.mxu0 0.0
      %450 = vmatprep.subr.mxu0 0.0
      %451 = vmatpush1.msra.mxu0 0.0
      %452 = vmatprep.subr.mxu0 0.0
      %453 = vmatpush1.msra.mxu0 0.0
      %454 = vmatprep.subr.mxu0 0.0
      %455 = vmatpush1.msra.mxu0 0.0
      %456 = vmatprep.subr.mxu0 0.0
      %457 = vmatpush1.msra.mxu0 0.0
      %458 = vmatprep.subr.mxu0 0.0
      %459 = vmatpush1.msra.mxu0 0.0
      %460 = vmatprep.subr.mxu0 0.0
      %461 = vmatpush1.msra.mxu0 0.0
      %462 = vmatprep.subr.mxu0 0.0
      %463 = vmatpush1.msra.mxu0 0.0
      %464 = vmatprep.subr.mxu0 0.0
      %465 = vmatpush1.msra.mxu0 0.0
      %466 = vmatprep.subr.mxu0 0.0
      %467 = vmatpush1.msra.mxu0 0.0
      %468 = vmatprep.subr.mxu0 0.0
      %469 = vmatpush1.msra.mxu0 0.0
      %470 = vmatprep.subr.mxu0 0.0
      %471 = vmatpush1.msra.mxu0 0.0
      %472 = vmatprep.subr.mxu0 0.0
      %473 = vmatpush1.msra.mxu0 0.0
      %474 = vmatprep.subr.mxu0 0.0
      %475 = vmatpush1.msra.mxu0 0.0
      %476 = vmatprep.subr.mxu0 0.0
      %477 = vmatpush1.msra.mxu0 0.0
      %478 = vmatprep.subr.mxu0 0.0
      %479 = vmatpush1.msra.mxu0 0.0
      %480 = vmatprep.subr.mxu0 0.0
      %481 = vmatpush1.msra.mxu0 0.0
      %482 = vmatprep.mubr.f32.mxu0 0.0
      %483 = vmatmul.mubr.f32.gmra.mrb[0].mxu0 %v407
      %v484 = vpop.f32.mrb[0].mxu0
      %v485 = vadd.f32 %v403, %v484
      %v486 = vpop.f32.mrb[0].mxu0
      %487 = vmatprep.mubr.f32.mxu0 0.0
      %488 = vmatmul.mubr.f32.gmra.mrb[0].mxu0 %v410
      %v489 = vpop.f32.mrb[0].mxu0
      %v490 = vadd.f32 %v403, %v489
      %v491 = vpop.f32.mrb[0].mxu0
      %492 = vmatprep.mubr.f32.mxu0 0.0
      %493 = vmatmul.mubr.f32.gmra.mrb[0].mxu0 %v413
      %v494 = vpop.f32.mrb[0].mxu0
      %v495 = vadd.f32 %v403, %v494
      %v496 = vpop.f32.mrb[0].mxu0
      %497 = vmatprep.mubr.f32.mxu0 0.0
      %498 = vmatmul.mubr.f32.gmra.mrb[0].mxu0 %v416
      %v499 = vpop.f32.mrb[0].mxu0
      %v500 = vadd.f32 %v403, %v499
      %v501 = vpop.f32.mrb[0].mxu0
      %502 = vdwg.mxu0
      %v503 = vmul.f32 %v485, 1.442695
      %v504 = vpow.pop %v503
      %v505 = vmul.f32 %v490, 1.442695
      %v506 = vpow.pop %v505
      %v507 = vmul.f32 %v495, 1.442695
      %v508 = vpow.pop %v507
      %v509 = vmul.f32 %v500, 1.442695
      %v510 = vpow.pop %v509
      %v511 = vld [vmem:[%s269] sm:$0xff]
      %v512 = vld [vmem:[%s269 + $0x8] sm:$0xff]
      %v513 = vld [vmem:[%s269 + $0x10] sm:$0xff]
      %v514 = vld [vmem:[%s269 + $0x18] sm:$0xff]
      %519 = vrot.lane.b32.xlu0 %v485, 112
      %v520 = vpop.permute.xlu0 %519
      %521 = vrot.lane.b32.xlu0 %v490, 112
      %v522 = vpop.permute.xlu0 %521
      %523 = vrot.lane.b32.xlu0 %v495, 112
      %v524 = vpop.permute.xlu0 %523
      %525 = vrot.lane.b32.xlu0 %v500, 112
      %v526 = vpop.permute.xlu0 %525
      %v531 = vmul.f32 %v511, %v520
      %v532 = vmul.f32 %v512, %v522
      %v533 = vmul.f32 %v513, %v524
      %v534 = vmul.f32 %v514, %v526
      %v535 = vadd.f32 %v531, %v504
      %v536 = vadd.f32 %v532, %v506
      %v537 = vadd.f32 %v533, %v508
      %v538 = vadd.f32 %v534, %v510
      %543 = vrot.lane.b32.xlu0 %v504, 16
      %v544 = vpop.permute.xlu0 %543
      %545 = vrot.lane.b32.xlu0 %v506, 16
      %v546 = vpop.permute.xlu0 %545
      %547 = vrot.lane.b32.xlu0 %v508, 16
      %v548 = vpop.permute.xlu0 %547
      %549 = vrot.lane.b32.xlu0 %v510, 16
      %v550 = vpop.permute.xlu0 %549
      %555 = vrot.lane.b32.xlu0 %v485, 16
      %v556 = vpop.permute.xlu0 %555
      %557 = vrot.lane.b32.xlu0 %v490, 16
      %v558 = vpop.permute.xlu0 %557
      %559 = vrot.lane.b32.xlu0 %v495, 16
      %v560 = vpop.permute.xlu0 %559
      %561 = vrot.lane.b32.xlu0 %v500, 16
      %v562 = vpop.permute.xlu0 %561
      %vm567 = vcmask 130048
      %v568 = vsel %vm567, %v535, %v544
      %v569 = vsel %vm567, %v536, %v546
      %v570 = vsel %vm567, %v537, %v548
      %v571 = vsel %vm567, %v538, %v550
      %v572 = vsel %vm292, %v568, %v556
      %v573 = vsel %vm292, %v569, %v558
      %v574 = vsel %vm292, %v570, %v560
      %v575 = vsel %vm292, %v571, %v562
      %vm576 = vcmask 392192
      %577 = vst.msk [vmem:[%s275] sm:$0xff] %vm576, %v572
      %578 = vst.msk [vmem:[%s275 + $0x8] sm:$0xff] %vm576, %v573
      %579 = vst.msk [vmem:[%s275 + $0x10] sm:$0xff] %vm576, %v574
      %580 = vst.msk [vmem:[%s275 + $0x18] sm:$0xff] %vm576, %v575
      %s581 = smul.u32 4, %s17
      %p582 = scmp.lt.s32.totalorder %s581, 7
      %s583 = scalar_select %p582, %s581, 7
      %s584 = smul.addr %s583, 8
      %s585 = scalar_lea.vmem %s6, %s584
      // Predicated region
      $region45: #{tpu_custom_call.1} parent=43 // pred_check
        %p586 = pneg %p171
      $region46: #{tpu_custom_call.1} parent=43 // pred_check_branch
        %588 = sbr.rel (%p586) target = $region48
      $region47: #{tpu_custom_call.1} parent=43 // pred_region
        %s589 = smul.u32 4, %s17
      $region48: #{tpu_custom_call.1} parent=43 // pred_fallthru
        _
    $region44: #{tpu_custom_call.1} parent=5 // pred_fallthru
      _
    %p590 = scmp.le.s32.totalorder 2, %s12
    // Predicated region
    $region49: #{tpu_custom_call.1} parent=5 // pred_check
      %p591 = pneg %p590
    $region50: #{tpu_custom_call.1} parent=5 // pred_check_branch
      %593 = sbr.rel (%p591) target = $region52
    $region51: #{tpu_custom_call.1} parent=5 // pred_region
      %s594 = ssub.s32 %s12, 2
      // Predicated region
      $region53: #{tpu_custom_call.1} parent=51 // pred_check
        %p595 = pneg %p177
      $region54: #{tpu_custom_call.1} parent=51 // pred_check_branch
        %597 = sbr.rel (%p595) target = $region56
      $region55: #{tpu_custom_call.1} parent=51 // pred_region
        %s598 = smul.u32 4, %s18
        %p599 = scmp.lt.s32.totalorder %s598, 7
        %s600 = scalar_select %p599, %s598, 7
        %s601 = smul.addr %s600, 8
        %s602 = scalar_lea.vmem %s6, %s601
      $region56: #{tpu_custom_call.1} parent=51 // pred_fallthru
        _
    $region52: #{tpu_custom_call.1} parent=5 // pred_fallthru
      _
  $region6: #{tpu_custom_call.1} parent=0 // loop_footer
    %s16 = sadd.s32 1, %s12
  $region7: #{tpu_custom_call.1} parent=0 // loop_footer_branch
    %11 = sbr.rel target = $region3
  $region8: #{tpu_custom_call.1} parent=0 // loop_exit
    _

</llo_original>
